<compile_context>
chip_gen: v5e
topology: v5e:2x2
jax: 0.10.0
libtpu: 0.0.40
codegen_flags: <defaults>
</compile_context>

<pallas_src>
import functools
import math

import jax
import jax.numpy as jnp
from jax import lax
from jax.experimental import pallas as pl
from jax.experimental.pallas import tpu as pltpu

EPS = 1e-5                       # nn.BatchNorm1d default eps
VPU_MAX_C = 8                    # <= this: 1x1 conv via VPU rank-1 FMAs
BF16_MIN_C = 64                  # >= this: bf16 MXU operands (f32 accumulation)
TARGET_BLOCK_BYTES = 2 << 20     # ~2 MiB per (C, lt) block
MAX_L_TILE = 65536


def _vmem_limit_bytes():
    try:
        cap = int(pltpu.get_tpu_info().vmem_capacity_bytes)
        return max(32 << 20, min((cap * 3) // 4, 96 << 20))
    except Exception:
        return 48 << 20          # safe on v5e / v6e / v7x


def _pick_l_tile(L, C):
    """Pick the length-tile: ~TARGET_BLOCK_BYTES per (C, lt) f32 block."""
    lanes = TARGET_BLOCK_BYTES // (4 * C)
    lanes = max(128, min(lanes, MAX_L_TILE))
    if lanes >= L:
        return L
    align = 1024 if lanes >= 1024 else 128
    lanes -= lanes % align
    nt = (L + lanes - 1) // lanes
    per = (L + nt - 1) // nt                      # balance the tiles
    return ((per + align - 1) // align) * align


def _pick_chunk(lt):
    """Lane chunk for the register-resident VPU path."""
    for ch in (1024, 512, 256, 128):
        if lt % ch == 0:
            return ch
    return lt


def _vpu_conv(w, x, C):
    """(C, C) @ (C, ch) via rank-1 broadcast-FMAs, 2 partial accumulators."""
    acc0 = w[:, 0:1] * x[0:1, :]
    acc1 = None
    for c in range(1, C):
        term = w[:, c:c + 1] * x[c:c + 1, :]
        if c % 2:
            acc1 = term if acc1 is None else acc1 + term
        else:
            acc0 = acc0 + term
    return acc0 if acc1 is None else acc0 + acc1


# ---------------------------- pass 1: statistics ----------------------------

def _make_stats_kernel_mxu(L, lt, needs_mask, per_batch):
    def kernel(x_ref, w1_ref, sumh_ref, sumsq_ref, gram_ref):
        li = pl.program_id(1)
        init = (li == 0) if per_batch else ((pl.program_id(0) == 0) & (li == 0))

        @pl.when(init)
        def _():
            sumh_ref[...] = jnp.zeros_like(sumh_ref)
            sumsq_ref[...] = jnp.zeros_like(sumsq_ref)
            gram_ref[...] = jnp.zeros_like(gram_ref)

        x = x_ref[...]                                   # (C, lt) f32
        w1 = w1_ref[...]                                 # (C, C) f32 or bf16
        h = jnp.maximum(jnp.dot(w1, x.astype(w1.dtype),
                                preferred_element_type=jnp.float32), 0.0)
        if needs_mask:
            col = lax.broadcasted_iota(jnp.int32, h.shape, 1)
            h = jnp.where(col < (L - li * lt), h, 0.0)   # zero OOB columns
        sumh_ref[...] += jnp.sum(h, axis=1, keepdims=True)
        sumsq_ref[...] += jnp.sum(h * h, axis=1, keepdims=True)
        hg = h.astype(w1.dtype)
        gram_ref[...] += lax.dot_general(
            hg, hg, (((1,), (1,)), ((), ())),
            preferred_element_type=jnp.float32)
    return kernel


def _make_stats_kernel_vpu(C, L, lt, needs_mask, per_batch):
    ch = _pick_chunk(lt)
    nchunks = lt // ch

    def kernel(x_ref, w1_ref, sumh_ref, sumsq_ref, gram_ref):
        li = pl.program_id(1)
        init = (li == 0) if per_batch else ((pl.program_id(0) == 0) & (li == 0))

        @pl.when(init)
        def _():
            sumh_ref[...] = jnp.zeros_like(sumh_ref)
            sumsq_ref[...] = jnp.zeros_like(sumsq_ref)
            gram_ref[...] = jnp.zeros_like(gram_ref)

        w1 = w1_ref[...]
        if needs_mask:
            valid = L - li * lt
        sh = jnp.zeros((C, 1), jnp.float32)
        sq = jnp.zeros((C, 1), jnp.float32)
        gm = jnp.zeros((C, C), jnp.float32)
        for k in range(nchunks):                         # static, register-resident
            xc = x_ref[:, k * ch:(k + 1) * ch]
            hc = jnp.maximum(_vpu_conv(w1, xc, C), 0.0)
            if needs_mask:
                col = lax.broadcasted_iota(jnp.int32, hc.shape, 1) + k * ch
                hc = jnp.where(col < valid, hc, 0.0)
            sh = sh + jnp.sum(hc, axis=1, keepdims=True)
            sq = sq + jnp.sum(hc * hc, axis=1, keepdims=True)
            gm = gm + lax.dot_general(hc, hc, (((1,), (1,)), ((), ())),
                                      preferred_element_type=jnp.float32)
        sumh_ref[...] += sh
        sumsq_ref[...] += sq
        gram_ref[...] += gm
    return kernel


# ------------------------------ pass 2: apply -------------------------------

def _apply_kernel_mxu(x_ref, w1_ref, w2_ref, b2_ref, o_ref):
    x = x_ref[...]
    w1 = w1_ref[...]
    w2 = w2_ref[...]
    h = jnp.maximum(jnp.dot(w1, x.astype(w1.dtype),
                            preferred_element_type=jnp.float32), 0.0)
    z = jnp.dot(w2, h.astype(w2.dtype),
                preferred_element_type=jnp.float32) + b2_ref[...]
    o_ref[...] = jnp.maximum(z + x, 0.0)


def _make_apply_kernel_vpu(C, lt):
    ch = _pick_chunk(lt)
    nchunks = lt // ch

    def kernel(x_ref, w1_ref, w2_ref, b2_ref, o_ref):
        w1 = w1_ref[...]
        w2 = w2_ref[...]
        b2 = b2_ref[...]
        for k in range(nchunks):
            sl = slice(k * ch, (k + 1) * ch)
            xc = x_ref[:, sl]
            hc = jnp.maximum(_vpu_conv(w1, xc, C), 0.0)
            zc = _vpu_conv(w2, hc, C) + b2
            o_ref[:, sl] = jnp.maximum(zc + xc, 0.0)
    return kernel


# --------------------------- host-side BN folding ---------------------------

def _fold_bn(sum_h, sum_h2, gram, w2, g1, b1, g2, b2, n):
    """Fold BN1 -> conv2 -> BN2 (training-mode batch stats) into W2eff, bias2."""
    hi = jax.lax.Precision.HIGHEST
    mean1 = sum_h[:, 0] / n
    var1 = jnp.maximum(sum_h2[:, 0] / n - mean1 * mean1, 0.0)   # f32 sum(h^2)
    s1 = g1 * lax.rsqrt(var1 + EPS)
    sh1 = b1 - mean1 * s1
    cov_h = gram / n - jnp.outer(mean1, mean1)
    cov_h = cov_h + jnp.diag(var1 - jnp.diagonal(cov_h))        # f32 diagonal
    cov_y = cov_h * jnp.outer(s1, s1)
    # y = BN1(h) has per-channel mean exactly b1; z = W2 @ y.
    mean2 = jnp.dot(w2, b1, precision=hi)
    var2 = jnp.maximum(jnp.einsum("oc,cd,od->o", w2, cov_y, w2, precision=hi),
                       0.0)
    s2 = g2 * lax.rsqrt(var2 + EPS)
    sh2 = b2 - mean2 * s2
    w2eff = s2[:, None] * w2 * s1[None, :]
    bias2 = s2 * jnp.dot(w2, sh1, precision=hi) + sh2
    return w2eff, bias2


# --------------------------------- wrapper ----------------------------------

@functools.partial(jax.jit, static_argnames=("l_tile",))
def resnet_basic(x_ncl, w1, w2, g1, b1, g2, b2, *, l_tile=None):
    """x_ncl: (B, C, L) f32; w*: (C, C, 1) conv weights; g*/b*: (C,) BN affine."""
    B, C, L = x_ncl.shape
    x_ncl = x_ncl.astype(jnp.float32)
    w1f = w1[:, :, 0].astype(jnp.float32)
    w2f = w2[:, :, 0].astype(jnp.float32)
    g1, b1 = g1.astype(jnp.float32), b1.astype(jnp.float32)
    g2, b2 = g2.astype(jnp.float32), b2.astype(jnp.float32)

    if l_tile is not None:
        lt = min(int(l_tile), L)
        if lt != L:
            assert lt % 128 == 0, "l_tile must be a multiple of 128 (or >= L)"
    else:
        lt = _pick_l_tile(L, C)
    nt = (L + lt - 1) // lt
    needs_mask = (L % lt) != 0
    n = B * L

    vpu = C <= VPU_MAX_C
    use_bf16 = (not vpu) and C >= BF16_MIN_C
    op_dtype = jnp.bfloat16 if use_bf16 else jnp.float32
    vmem_limit = _vmem_limit_bytes()

    # Per-batch partial accumulators (lets the stats grid shard across TCs on
    # v7x) unless the extra HBM traffic for the partials would be noticeable.
    partial_bytes = 2 * B * C * (C + 2) * 4
    use_partials = (B > 1) and (partial_bytes <= (8 << 20)
                                or partial_bytes * 8 <= 4 * n * C)

    x_spec = pl.BlockSpec((None, C, lt), lambda b, l: (b, 0, l))
    vmem_full = pl.BlockSpec(memory_space=pltpu.MemorySpace.VMEM)
    w1_op = w1f.astype(op_dtype)

    # ---- pass 1: BN statistics -------------------------------------------
    if vpu:
        stats_kernel = _make_stats_kernel_vpu(C, L, lt, needs_mask, use_partials)
    else:
        stats_kernel = _make_stats_kernel_mxu(L, lt, needs_mask, use_partials)

    if use_partials:
        out_shape = (jax.ShapeDtypeStruct((B, C, 1), jnp.float32),
                     jax.ShapeDtypeStruct((B, C, 1), jnp.float32),
                     jax.ShapeDtypeStruct((B, C, C), jnp.float32))
        out_specs = (pl.BlockSpec((None, C, 1), lambda b, l: (b, 0, 0)),
                     pl.BlockSpec((None, C, 1), lambda b, l: (b, 0, 0)),
                     pl.BlockSpec((None, C, C), lambda b, l: (b, 0, 0)))
        stats_sem = ("parallel", "arbitrary")
    else:
        out_shape = (jax.ShapeDtypeStruct((C, 1), jnp.float32),
                     jax.ShapeDtypeStruct((C, 1), jnp.float32),
                     jax.ShapeDtypeStruct((C, C), jnp.float32))
        out_specs = (pl.BlockSpec((C, 1), lambda b, l: (0, 0)),
                     pl.BlockSpec((C, 1), lambda b, l: (0, 0)),
                     pl.BlockSpec((C, C), lambda b, l: (0, 0)))
        stats_sem = ("arbitrary", "arbitrary")

    sum_h, sum_h2, gram = pl.pallas_call(
        stats_kernel,
        out_shape=out_shape,
        grid=(B, nt),
        in_specs=[x_spec, vmem_full],
        out_specs=out_specs,
        compiler_params=pltpu.CompilerParams(
            dimension_semantics=stats_sem,
            vmem_limit_bytes=vmem_limit),
        cost_estimate=pl.CostEstimate(
            flops=4 * n * C * C, transcendentals=0,
            bytes_accessed=4 * (n * C + C * C + 2 * C) + partial_bytes),
    )(x_ncl, w1_op)

    if use_partials:
        sum_h, sum_h2, gram = sum_h.sum(0), sum_h2.sum(0), gram.sum(0)

    # ---- host-side fold of BN1 -> conv2 -> BN2 into W2eff / bias2 (tiny) ---
    w2eff, bias2 = _fold_bn(sum_h, sum_h2, gram, w2f, g1, b1, g2, b2, n)

    # ---- pass 2: apply (independent tiles -> parallel / megacore) ----------
    apply_kernel = (_make_apply_kernel_vpu(C, lt) if vpu else _apply_kernel_mxu)
    out = pl.pallas_call(
        apply_kernel,
        out_shape=jax.ShapeDtypeStruct((B, C, L), jnp.float32),
        grid=(B, nt),
        in_specs=[x_spec, vmem_full, vmem_full, vmem_full],
        out_specs=x_spec,
        compiler_params=pltpu.CompilerParams(
            dimension_semantics=("parallel", "parallel"),
            vmem_limit_bytes=vmem_limit),
        cost_estimate=pl.CostEstimate(
            flops=4 * n * C * C, transcendentals=0,
            bytes_accessed=4 * (2 * n * C + 2 * C * C + C)),
    )(x_ncl, w1_op, w2eff.astype(op_dtype), bias2.reshape(C, 1))
    return out


# -------------------------------- reference ---------------------------------

def _reference(x_ncl, w1, w2, g1, b1, g2, b2):
    """Pure-JAX reference mirroring the PyTorch forward (training-mode BN)."""
    hi = jax.lax.Precision.HIGHEST

    def conv(x, w):   # kernel_size=1 Conv1d in NCL layout
        return jnp.einsum("bcl,oc->bol", x, w[:, :, 0], precision=hi)

    def bn(x, g, b):  # per-channel stats over (B, L), biased variance
        mean = x.mean(axis=(0, 2), keepdims=True)
        var = ((x - mean) ** 2).mean(axis=(0, 2), keepdims=True)
        return (x - mean) / jnp.sqrt(var + EPS) * g[None, :, None] + b[None, :, None]

    out = bn(jnp.maximum(conv(x_ncl, w1), 0.0), g1, b1)
    out = bn(conv(out, w2), g2, b2)
    return jnp.maximum(out + x_ncl, 0.0)


if __name__ == "__main__":
    base_key = jax.random.PRNGKey(0)

    def run_case(case_id, B, C, L, l_tile, tol):
        key = jax.random.fold_in(base_key, case_id)
        kx, kw1, kw2, kg1, kb1, kg2, kb2 = jax.random.split(key, 7)
        x = jax.random.normal(kx, (B, C, L), dtype=jnp.float32)
        bound = 1.0 / math.sqrt(C * 1)   # nn.Conv1d(C, C, 1, bias=False) init bound
        w1 = jax.random.uniform(kw1, (C, C, 1), jnp.float32, -bound, bound)
        w2 = jax.random.uniform(kw2, (C, C, 1), jnp.float32, -bound, bound)
        g1 = jax.random.uniform(kg1, (C,), jnp.float32, 0.5, 1.5)
        b1 = jax.random.uniform(kb1, (C,), jnp.float32, -0.5, 0.5)
        g2 = jax.random.uniform(kg2, (C,), jnp.float32, 0.5, 1.5)
        b2 = jax.random.uniform(kb2, (C,), jnp.float32, -0.5, 0.5)

        out = jax.block_until_ready(
            resnet_basic(x, w1, w2, g1, b1, g2, b2, l_tile=l_tile))
        ref = _reference(x, w1, w2, g1, b1, g2, b2)
        assert out.shape == (B, C, L)
        assert jnp.allclose(out, ref, atol=tol, rtol=tol), (
            f"mismatch vs reference (case {case_id}: B={B}, C={C}, L={L})")

    # Tiny shape from the module spec: exercises the small-C VPU path.
    run_case(0, 2, 4, 16, None, 1e-4)
    # Multi-tile case with a non-dividing L: exercises the f32 MXU path,
    # per-batch partial stats accumulators and partial-tile column masking.
    run_case(1, 2, 16, 200, 128, 2e-3)

    print("KERNEL_OK")
</pallas_src>

<mosaic_0001>
module attributes {stable_mosaic.version = 11 : i64} {
  func.func @kernel(%arg0: i32, %arg1: i32, %arg2: memref<1x4x16xf32, #tpu.memory_space<vmem>>, %arg3: memref<4x4xf32, #tpu.memory_space<vmem>>, %arg4: memref<1x4x1xf32, #tpu.memory_space<vmem>>, %arg5: memref<1x4x1xf32, #tpu.memory_space<vmem>>, %arg6: memref<1x4x4xf32, #tpu.memory_space<vmem>>) attributes {dimension_semantics = [#tpu.dimension_semantics<parallel>, #tpu.dimension_semantics<arbitrary>], iteration_bounds = array<i64: 2, 1>, scalar_prefetch = 0 : i64, scratch_operands = 0 : i64, tpu.core_type = #tpu.core_type<tc>, window_params = [{transform_indices = @transform_0, window_bounds = array<i64: 1, 4, 16>}, {pipeline_mode = #tpu.pipeline_mode<synchronous>, transform_indices = @transform_1, window_bounds = array<i64: 4, 4>}, {transform_indices = @transform_2, window_bounds = array<i64: 1, 4, 1>}, {transform_indices = @transform_3, window_bounds = array<i64: 1, 4, 1>}, {transform_indices = @transform_4, window_bounds = array<i64: 1, 4, 4>}]} {
    %c0_i32 = arith.constant 0 : i32
    %0 = arith.cmpi eq, %arg1, %c0_i32 : i32
    %1 = arith.extui %0 : i1 to i32
    %c0_i32_0 = arith.constant 0 : i32
    %2 = arith.cmpi ne, %1, %c0_i32_0 : i32
    scf.if %2 {
      %cst_29 = arith.constant 0.000000e+00 : f32
      %61 = vector.broadcast %cst_29 : f32 to vector<4x1xf32>
      %c0_30 = arith.constant 0 : index
      %c0_31 = arith.constant 0 : index
      %c0_32 = arith.constant 0 : index
      %62 = vector.load %arg4[%c0_30, %c0_31, %c0_32] : memref<1x4x1xf32, #tpu.memory_space<vmem>>, vector<1x4x1xf32>
      %63 = vector.shape_cast %62 : vector<1x4x1xf32> to vector<4x1xf32>
      %64 = vector.shape_cast %61 : vector<4x1xf32> to vector<1x4x1xf32>
      tpu.vector_store %arg4[%c0_30, %c0_31, %c0_32], %64 {strides = array<i32>} : memref<1x4x1xf32, #tpu.memory_space<vmem>>, vector<1x4x1xf32>,
      %cst_33 = arith.constant 0.000000e+00 : f32
      %65 = vector.broadcast %cst_33 : f32 to vector<4x1xf32>
      %c0_34 = arith.constant 0 : index
      %c0_35 = arith.constant 0 : index
      %c0_36 = arith.constant 0 : index
      %66 = vector.load %arg5[%c0_34, %c0_35, %c0_36] : memref<1x4x1xf32, #tpu.memory_space<vmem>>, vector<1x4x1xf32>
      %67 = vector.shape_cast %66 : vector<1x4x1xf32> to vector<4x1xf32>
      %68 = vector.shape_cast %65 : vector<4x1xf32> to vector<1x4x1xf32>
      tpu.vector_store %arg5[%c0_34, %c0_35, %c0_36], %68 {strides = array<i32>} : memref<1x4x1xf32, #tpu.memory_space<vmem>>, vector<1x4x1xf32>,
      %cst_37 = arith.constant 0.000000e+00 : f32
      %69 = vector.broadcast %cst_37 : f32 to vector<4x4xf32>
      %c0_38 = arith.constant 0 : index
      %c0_39 = arith.constant 0 : index
      %c0_40 = arith.constant 0 : index
      %70 = vector.load %arg6[%c0_38, %c0_39, %c0_40] : memref<1x4x4xf32, #tpu.memory_space<vmem>>, vector<1x4x4xf32>
      %71 = vector.shape_cast %70 : vector<1x4x4xf32> to vector<4x4xf32>
      %72 = vector.shape_cast %69 : vector<4x4xf32> to vector<1x4x4xf32>
      tpu.vector_store %arg6[%c0_38, %c0_39, %c0_40], %72 {strides = array<i32>} : memref<1x4x4xf32, #tpu.memory_space<vmem>>, vector<1x4x4xf32>,
    } else {
    }
    %c0 = arith.constant 0 : index
    %c0_1 = arith.constant 0 : index
    %3 = vector.load %arg3[%c0, %c0_1] : memref<4x4xf32, #tpu.memory_space<vmem>>, vector<4x4xf32>
    %cst = arith.constant 0.000000e+00 : f32
    %4 = vector.broadcast %cst : f32 to vector<4x1xf32>
    %cst_2 = arith.constant 0.000000e+00 : f32
    %5 = vector.broadcast %cst_2 : f32 to vector<4x1xf32>
    %cst_3 = arith.constant 0.000000e+00 : f32
    %6 = vector.broadcast %cst_3 : f32 to vector<4x4xf32>
    %c0_4 = arith.constant 0 : index
    %c0_5 = arith.constant 0 : index
    %c0_6 = arith.constant 0 : index
    %7 = vector.load %arg2[%c0_4, %c0_5, %c0_6] : memref<1x4x16xf32, #tpu.memory_space<vmem>>, vector<1x4x16xf32>
    %8 = vector.shape_cast %7 : vector<1x4x16xf32> to vector<4x16xf32>
    %9 = vector.extract_strided_slice %3 {offsets = [0, 0], sizes = [4, 1], strides = [1, 1]} : vector<4x4xf32> to vector<4x1xf32>
    %10 = vector.extract_strided_slice %8 {offsets = [0, 0], sizes = [1, 16], strides = [1, 1]} : vector<4x16xf32> to vector<1x16xf32>
    %11 = vector.broadcast %9 : vector<4x1xf32> to vector<4x16xf32>
    %12 = vector.broadcast %10 : vector<1x16xf32> to vector<4x16xf32>
    %13 = arith.mulf %11, %12 : vector<4x16xf32>
    %14 = vector.extract_strided_slice %3 {offsets = [0, 1], sizes = [4, 1], strides = [1, 1]} : vector<4x4xf32> to vector<4x1xf32>
    %15 = vector.extract_strided_slice %8 {offsets = [1, 0], sizes = [1, 16], strides = [1, 1]} : vector<4x16xf32> to vector<1x16xf32>
    %16 = vector.broadcast %14 : vector<4x1xf32> to vector<4x16xf32>
    %17 = vector.broadcast %15 : vector<1x16xf32> to vector<4x16xf32>
    %18 = arith.mulf %16, %17 : vector<4x16xf32>
    %19 = vector.extract_strided_slice %3 {offsets = [0, 2], sizes = [4, 1], strides = [1, 1]} : vector<4x4xf32> to vector<4x1xf32>
    %20 = vector.extract_strided_slice %8 {offsets = [2, 0], sizes = [1, 16], strides = [1, 1]} : vector<4x16xf32> to vector<1x16xf32>
    %21 = vector.broadcast %19 : vector<4x1xf32> to vector<4x16xf32>
    %22 = vector.broadcast %20 : vector<1x16xf32> to vector<4x16xf32>
    %23 = arith.mulf %21, %22 : vector<4x16xf32>
    %24 = arith.addf %13, %23 : vector<4x16xf32>
    %25 = vector.extract_strided_slice %3 {offsets = [0, 3], sizes = [4, 1], strides = [1, 1]} : vector<4x4xf32> to vector<4x1xf32>
    %26 = vector.extract_strided_slice %8 {offsets = [3, 0], sizes = [1, 16], strides = [1, 1]} : vector<4x16xf32> to vector<1x16xf32>
    %27 = vector.broadcast %25 : vector<4x1xf32> to vector<4x16xf32>
    %28 = vector.broadcast %26 : vector<1x16xf32> to vector<4x16xf32>
    %29 = arith.mulf %27, %28 : vector<4x16xf32>
    %30 = arith.addf %18, %29 : vector<4x16xf32>
    %31 = arith.addf %24, %30 : vector<4x16xf32>
    %cst_7 = arith.constant 0.000000e+00 : f32
    %32 = vector.broadcast %cst_7 : f32 to vector<4x16xf32>
    %33 = arith.maximumf %31, %32 : vector<4x16xf32>
    %cst_8 = arith.constant dense<0.000000e+00> : vector<4xf32>
    %34 = vector.multi_reduction <add>, %33, %cst_8 [1] : vector<4x16xf32> to vector<4xf32>
    %35 = vector.shape_cast %34 : vector<4xf32> to vector<4x1xf32>
    %36 = arith.addf %4, %35 : vector<4x1xf32>
    %37 = arith.mulf %33, %33 : vector<4x16xf32>
    %cst_9 = arith.constant dense<0.000000e+00> : vector<4xf32>
    %38 = vector.multi_reduction <add>, %37, %cst_9 [1] : vector<4x16xf32> to vector<4xf32>
    %39 = vector.shape_cast %38 : vector<4xf32> to vector<4x1xf32>
    %40 = arith.addf %5, %39 : vector<4x1xf32>
    %cst_10 = arith.constant dense<0.000000e+00> : vector<4x4xf32>
    %41 = tpu.matmul %33, %33, %cst_10 {dimension_numbers = #tpu.dot_dimension_numbers<[1], [1], [0], [0], [0, 0, 1, 0], [], []>} : vector<4x16xf32>, vector<4x16xf32>, vector<4x4xf32> -> vector<4x4xf32>
    %42 = arith.addf %6, %41 : vector<4x4xf32>
    %c0_11 = arith.constant 0 : index
    %c0_12 = arith.constant 0 : index
    %c0_13 = arith.constant 0 : index
    %43 = vector.load %arg4[%c0_11, %c0_12, %c0_13] : memref<1x4x1xf32, #tpu.memory_space<vmem>>, vector<1x4x1xf32>
    %44 = vector.shape_cast %43 : vector<1x4x1xf32> to vector<4x1xf32>
    %45 = arith.addf %44, %36 : vector<4x1xf32>
    %c0_14 = arith.constant 0 : index
    %c0_15 = arith.constant 0 : index
    %c0_16 = arith.constant 0 : index
    %46 = vector.load %arg4[%c0_14, %c0_15, %c0_16] : memref<1x4x1xf32, #tpu.memory_space<vmem>>, vector<1x4x1xf32>
    %47 = vector.shape_cast %46 : vector<1x4x1xf32> to vector<4x1xf32>
    %48 = vector.shape_cast %45 : vector<4x1xf32> to vector<1x4x1xf32>
    tpu.vector_store %arg4[%c0_14, %c0_15, %c0_16], %48 {strides = array<i32>} : memref<1x4x1xf32, #tpu.memory_space<vmem>>, vector<1x4x1xf32>,
    %c0_17 = arith.constant 0 : index
    %c0_18 = arith.constant 0 : index
    %c0_19 = arith.constant 0 : index
    %49 = vector.load %arg5[%c0_17, %c0_18, %c0_19] : memref<1x4x1xf32, #tpu.memory_space<vmem>>, vector<1x4x1xf32>
    %50 = vector.shape_cast %49 : vector<1x4x1xf32> to vector<4x1xf32>
    %51 = arith.addf %50, %40 : vector<4x1xf32>
    %c0_20 = arith.constant 0 : index
    %c0_21 = arith.constant 0 : index
    %c0_22 = arith.constant 0 : index
    %52 = vector.load %arg5[%c0_20, %c0_21, %c0_22] : memref<1x4x1xf32, #tpu.memory_space<vmem>>, vector<1x4x1xf32>
    %53 = vector.shape_cast %52 : vector<1x4x1xf32> to vector<4x1xf32>
    %54 = vector.shape_cast %51 : vector<4x1xf32> to vector<1x4x1xf32>
    tpu.vector_store %arg5[%c0_20, %c0_21, %c0_22], %54 {strides = array<i32>} : memref<1x4x1xf32, #tpu.memory_space<vmem>>, vector<1x4x1xf32>,
    %c0_23 = arith.constant 0 : index
    %c0_24 = arith.constant 0 : index
    %c0_25 = arith.constant 0 : index
    %55 = vector.load %arg6[%c0_23, %c0_24, %c0_25] : memref<1x4x4xf32, #tpu.memory_space<vmem>>, vector<1x4x4xf32>
    %56 = vector.shape_cast %55 : vector<1x4x4xf32> to vector<4x4xf32>
    %57 = arith.addf %56, %42 : vector<4x4xf32>
    %c0_26 = arith.constant 0 : index
    %c0_27 = arith.constant 0 : index
    %c0_28 = arith.constant 0 : index
    %58 = vector.load %arg6[%c0_26, %c0_27, %c0_28] : memref<1x4x4xf32, #tpu.memory_space<vmem>>, vector<1x4x4xf32>
    %59 = vector.shape_cast %58 : vector<1x4x4xf32> to vector<4x4xf32>
    %60 = vector.shape_cast %57 : vector<4x4xf32> to vector<1x4x4xf32>
    tpu.vector_store %arg6[%c0_26, %c0_27, %c0_28], %60 {strides = array<i32>} : memref<1x4x4xf32, #tpu.memory_space<vmem>>, vector<1x4x4xf32>,
    return
  }
  func.func @transform_0(%arg0: i32, %arg1: i32) -> (i32, i32, i32) {
    %c0_i32 = arith.constant 0 : i32
    %c0_i32_0 = arith.constant 0 : i32
    return %arg0, %c0_i32, %arg1 : i32, i32, i32
  }
  func.func @transform_1(%arg0: i32, %arg1: i32) -> (i32, i32) {
    %c0_i32 = arith.constant 0 : i32
    %c0_i32_0 = arith.constant 0 : i32
    %c0_i32_1 = arith.constant 0 : i32
    return %c0_i32, %c0_i32_0 : i32, i32
  }
  func.func @transform_2(%arg0: i32, %arg1: i32) -> (i32, i32, i32) {
    %c0_i32 = arith.constant 0 : i32
    %c0_i32_0 = arith.constant 0 : i32
    %c0_i32_1 = arith.constant 0 : i32
    return %arg0, %c0_i32, %c0_i32_0 : i32, i32, i32
  }
  func.func @transform_3(%arg0: i32, %arg1: i32) -> (i32, i32, i32) {
    %c0_i32 = arith.constant 0 : i32
    %c0_i32_0 = arith.constant 0 : i32
    %c0_i32_1 = arith.constant 0 : i32
    return %arg0, %c0_i32, %c0_i32_0 : i32, i32, i32
  }
  func.func @transform_4(%arg0: i32, %arg1: i32) -> (i32, i32, i32) {
    %c0_i32 = arith.constant 0 : i32
    %c0_i32_0 = arith.constant 0 : i32
    %c0_i32_1 = arith.constant 0 : i32
    return %arg0, %c0_i32, %c0_i32_0 : i32, i32, i32
  }
}

module attributes {stable_mosaic.version = 11 : i64} {
  func.func @kernel(%arg0: i32, %arg1: i32, %arg2: memref<1x4x16xf32, #tpu.memory_space<vmem>>, %arg3: memref<4x4xf32, #tpu.memory_space<vmem>>, %arg4: memref<4x4xf32, #tpu.memory_space<vmem>>, %arg5: memref<4x1xf32, #tpu.memory_space<vmem>>, %arg6: memref<1x4x16xf32, #tpu.memory_space<vmem>>) attributes {dimension_semantics = [#tpu.dimension_semantics<parallel>, #tpu.dimension_semantics<parallel>], iteration_bounds = array<i64: 2, 1>, scalar_prefetch = 0 : i64, scratch_operands = 0 : i64, tpu.core_type = #tpu.core_type<tc>, window_params = [{transform_indices = @transform_0, window_bounds = array<i64: 1, 4, 16>}, {pipeline_mode = #tpu.pipeline_mode<synchronous>, transform_indices = @transform_1, window_bounds = array<i64: 4, 4>}, {pipeline_mode = #tpu.pipeline_mode<synchronous>, transform_indices = @transform_2, window_bounds = array<i64: 4, 4>}, {pipeline_mode = #tpu.pipeline_mode<synchronous>, transform_indices = @transform_3, window_bounds = array<i64: 4, 1>}, {transform_indices = @transform_4, window_bounds = array<i64: 1, 4, 16>}]} {
    %c0 = arith.constant 0 : index
    %c0_0 = arith.constant 0 : index
    %0 = vector.load %arg3[%c0, %c0_0] : memref<4x4xf32, #tpu.memory_space<vmem>>, vector<4x4xf32>
    %c0_1 = arith.constant 0 : index
    %c0_2 = arith.constant 0 : index
    %1 = vector.load %arg4[%c0_1, %c0_2] : memref<4x4xf32, #tpu.memory_space<vmem>>, vector<4x4xf32>
    %c0_3 = arith.constant 0 : index
    %c0_4 = arith.constant 0 : index
    %2 = vector.load %arg5[%c0_3, %c0_4] : memref<4x1xf32, #tpu.memory_space<vmem>>, vector<4x1xf32>
    %c0_5 = arith.constant 0 : index
    %c0_6 = arith.constant 0 : index
    %c0_7 = arith.constant 0 : index
    %3 = vector.load %arg2[%c0_5, %c0_6, %c0_7] : memref<1x4x16xf32, #tpu.memory_space<vmem>>, vector<1x4x16xf32>
    %4 = vector.shape_cast %3 : vector<1x4x16xf32> to vector<4x16xf32>
    %5 = vector.extract_strided_slice %0 {offsets = [0, 0], sizes = [4, 1], strides = [1, 1]} : vector<4x4xf32> to vector<4x1xf32>
    %6 = vector.extract_strided_slice %4 {offsets = [0, 0], sizes = [1, 16], strides = [1, 1]} : vector<4x16xf32> to vector<1x16xf32>
    %7 = vector.broadcast %5 : vector<4x1xf32> to vector<4x16xf32>
    %8 = vector.broadcast %6 : vector<1x16xf32> to vector<4x16xf32>
    %9 = arith.mulf %7, %8 : vector<4x16xf32>
    %10 = vector.extract_strided_slice %0 {offsets = [0, 1], sizes = [4, 1], strides = [1, 1]} : vector<4x4xf32> to vector<4x1xf32>
    %11 = vector.extract_strided_slice %4 {offsets = [1, 0], sizes = [1, 16], strides = [1, 1]} : vector<4x16xf32> to vector<1x16xf32>
    %12 = vector.broadcast %10 : vector<4x1xf32> to vector<4x16xf32>
    %13 = vector.broadcast %11 : vector<1x16xf32> to vector<4x16xf32>
    %14 = arith.mulf %12, %13 : vector<4x16xf32>
    %15 = vector.extract_strided_slice %0 {offsets = [0, 2], sizes = [4, 1], strides = [1, 1]} : vector<4x4xf32> to vector<4x1xf32>
    %16 = vector.extract_strided_slice %4 {offsets = [2, 0], sizes = [1, 16], strides = [1, 1]} : vector<4x16xf32> to vector<1x16xf32>
    %17 = vector.broadcast %15 : vector<4x1xf32> to vector<4x16xf32>
    %18 = vector.broadcast %16 : vector<1x16xf32> to vector<4x16xf32>
    %19 = arith.mulf %17, %18 : vector<4x16xf32>
    %20 = arith.addf %9, %19 : vector<4x16xf32>
    %21 = vector.extract_strided_slice %0 {offsets = [0, 3], sizes = [4, 1], strides = [1, 1]} : vector<4x4xf32> to vector<4x1xf32>
    %22 = vector.extract_strided_slice %4 {offsets = [3, 0], sizes = [1, 16], strides = [1, 1]} : vector<4x16xf32> to vector<1x16xf32>
    %23 = vector.broadcast %21 : vector<4x1xf32> to vector<4x16xf32>
    %24 = vector.broadcast %22 : vector<1x16xf32> to vector<4x16xf32>
    %25 = arith.mulf %23, %24 : vector<4x16xf32>
    %26 = arith.addf %14, %25 : vector<4x16xf32>
    %27 = arith.addf %20, %26 : vector<4x16xf32>
    %cst = arith.constant 0.000000e+00 : f32
    %28 = vector.broadcast %cst : f32 to vector<4x16xf32>
    %29 = arith.maximumf %27, %28 : vector<4x16xf32>
    %30 = vector.extract_strided_slice %1 {offsets = [0, 0], sizes = [4, 1], strides = [1, 1]} : vector<4x4xf32> to vector<4x1xf32>
    %31 = vector.extract_strided_slice %29 {offsets = [0, 0], sizes = [1, 16], strides = [1, 1]} : vector<4x16xf32> to vector<1x16xf32>
    %32 = vector.broadcast %30 : vector<4x1xf32> to vector<4x16xf32>
    %33 = vector.broadcast %31 : vector<1x16xf32> to vector<4x16xf32>
    %34 = arith.mulf %32, %33 : vector<4x16xf32>
    %35 = vector.extract_strided_slice %1 {offsets = [0, 1], sizes = [4, 1], strides = [1, 1]} : vector<4x4xf32> to vector<4x1xf32>
    %36 = vector.extract_strided_slice %29 {offsets = [1, 0], sizes = [1, 16], strides = [1, 1]} : vector<4x16xf32> to vector<1x16xf32>
    %37 = vector.broadcast %35 : vector<4x1xf32> to vector<4x16xf32>
    %38 = vector.broadcast %36 : vector<1x16xf32> to vector<4x16xf32>
    %39 = arith.mulf %37, %38 : vector<4x16xf32>
    %40 = vector.extract_strided_slice %1 {offsets = [0, 2], sizes = [4, 1], strides = [1, 1]} : vector<4x4xf32> to vector<4x1xf32>
    %41 = vector.extract_strided_slice %29 {offsets = [2, 0], sizes = [1, 16], strides = [1, 1]} : vector<4x16xf32> to vector<1x16xf32>
    %42 = vector.broadcast %40 : vector<4x1xf32> to vector<4x16xf32>
    %43 = vector.broadcast %41 : vector<1x16xf32> to vector<4x16xf32>
    %44 = arith.mulf %42, %43 : vector<4x16xf32>
    %45 = arith.addf %34, %44 : vector<4x16xf32>
    %46 = vector.extract_strided_slice %1 {offsets = [0, 3], sizes = [4, 1], strides = [1, 1]} : vector<4x4xf32> to vector<4x1xf32>
    %47 = vector.extract_strided_slice %29 {offsets = [3, 0], sizes = [1, 16], strides = [1, 1]} : vector<4x16xf32> to vector<1x16xf32>
    %48 = vector.broadcast %46 : vector<4x1xf32> to vector<4x16xf32>
    %49 = vector.broadcast %47 : vector<1x16xf32> to vector<4x16xf32>
    %50 = arith.mulf %48, %49 : vector<4x16xf32>
    %51 = arith.addf %39, %50 : vector<4x16xf32>
    %52 = arith.addf %45, %51 : vector<4x16xf32>
    %53 = vector.broadcast %2 : vector<4x1xf32> to vector<4x16xf32>
    %54 = arith.addf %52, %53 : vector<4x16xf32>
    %55 = arith.addf %54, %4 : vector<4x16xf32>
    %cst_8 = arith.constant 0.000000e+00 : f32
    %56 = vector.broadcast %cst_8 : f32 to vector<4x16xf32>
    %57 = arith.maximumf %55, %56 : vector<4x16xf32>
    %c0_9 = arith.constant 0 : index
    %c0_10 = arith.constant 0 : index
    %c0_11 = arith.constant 0 : index
    %58 = vector.load %arg6[%c0_9, %c0_10, %c0_11] : memref<1x4x16xf32, #tpu.memory_space<vmem>>, vector<1x4x16xf32>
    %59 = vector.shape_cast %58 : vector<1x4x16xf32> to vector<4x16xf32>
    %60 = vector.shape_cast %57 : vector<4x16xf32> to vector<1x4x16xf32>
    tpu.vector_store %arg6[%c0_9, %c0_10, %c0_11], %60 {strides = array<i32>} : memref<1x4x16xf32, #tpu.memory_space<vmem>>, vector<1x4x16xf32>,
    return
  }
  func.func @transform_0(%arg0: i32, %arg1: i32) -> (i32, i32, i32) {
    %c0_i32 = arith.constant 0 : i32
    %c0_i32_0 = arith.constant 0 : i32
    return %arg0, %c0_i32, %arg1 : i32, i32, i32
  }
  func.func @transform_1(%arg0: i32, %arg1: i32) -> (i32, i32) {
    %c0_i32 = arith.constant 0 : i32
    %c0_i32_0 = arith.constant 0 : i32
    %c0_i32_1 = arith.constant 0 : i32
    return %c0_i32, %c0_i32_0 : i32, i32
  }
  func.func @transform_2(%arg0: i32, %arg1: i32) -> (i32, i32) {
    %c0_i32 = arith.constant 0 : i32
    %c0_i32_0 = arith.constant 0 : i32
    %c0_i32_1 = arith.constant 0 : i32
    return %c0_i32, %c0_i32_0 : i32, i32
  }
  func.func @transform_3(%arg0: i32, %arg1: i32) -> (i32, i32) {
    %c0_i32 = arith.constant 0 : i32
    %c0_i32_0 = arith.constant 0 : i32
    %c0_i32_1 = arith.constant 0 : i32
    return %c0_i32, %c0_i32_0 : i32, i32
  }
  func.func @transform_4(%arg0: i32, %arg1: i32) -> (i32, i32, i32) {
    %c0_i32 = arith.constant 0 : i32
    %c0_i32_0 = arith.constant 0 : i32
    return %arg0, %c0_i32, %arg1 : i32, i32, i32
  }
}

</mosaic_0001>

<llo_original>
// kernel: resnet_basic.2
$region0: #{resnet_basic.2}
  #allocation0 [shape = 'u32[]', space=smem, size = 0x4, offset = 0x4, fixed_abs, tag = 'smem constant byte address 0x4 - core index']
  #allocation1 [shape = 'u32[72,128]{1,0:T(1,128)}', space=vmem, size = 0x9000, scoped, tag = 'internal scratch']
  %s0 = inlined_call_operand.hbm [shape: f32[2,4,16], index: 0, kind: input, shape index: {}]
  %s1 = inlined_call_operand.vmem [shape: f32[4,4], index: 1, kind: input, shape index: {}]
  %s2 = inlined_call_operand.vmem [shape: f32[2,4,1], index: 2, kind: output, shape index: {0}]
  %s3 = inlined_call_operand.vmem [shape: f32[2,4,1], index: 3, kind: output, shape index: {1}]
  %s4 = inlined_call_operand.vmem [shape: f32[2,4,4], index: 4, kind: output, shape index: {2}]
  %5 = xla_tuple %s2, %s3, %s4
  %s6 = sld [smem:[#allocation0]]
  $region65: #{resnet_basic.2} parent=0
    _
  %s8 = ssub.s32 1, %s6
  %s9 = scalar_select 0, %s8, %s6
  $region1: #{resnet_basic.2} parent=0
    #allocation2 [shape = 'u8[4096]{0}', space=vmem, size = 0x1000, scoped, tag = 'input window, operand 0']
    #allocation3 [shape = 's32[2]{0}', space=sflag, size = 0x8, scoped, tag = 'scoped memory for resnet_basic.2']
    %10 = vsyncpa [#allocation3], 0
    %s11 = scalar_lea.sflag [#allocation3], 1
    %12 = vsyncpa %s11, 0
    loop: start=0, step=1, limit=4
    $region2: #{resnet_basic.2} parent=1 // loop_pre_header
      _
    $region3: #{resnet_basic.2} parent=1 // loop_header
      %s14 = sphi 0, %s18
      %p15 = scmp.ge.s32.totalorder %s14, 4
      %s21 = sphi 0, %s33
      %s22 = sphi 0, %s29
      %s23 = sphi 0, %s21
      %s24 = sphi 0, %s22
      %s25 = sphi 0, %s23
      %s26 = sphi 0, %s24
      %s38 = sphi 0, %s40
      %s41 = sphi 0, %s38
      %s42 = sphi 0, %s41
      %s58 = sphi 0, %s42
      %s62 = sphi 0, %s62
      %s64 = sphi 0, %s62
      %s65 = sphi 0, %s64
      %s79 = sphi 0, %s65
      %s85 = sphi 0, %s87
      %s88 = sphi 0, %s85
      %s89 = sphi 0, %s88
      %s105 = sphi 0, %s89
      %s111 = sphi 0, %s113
      %s114 = sphi 0, %s111
      %s115 = sphi 0, %s114
      %s131 = sphi 0, %s115
      %s137 = sphi 0, %s139
      %s140 = sphi 0, %s137
      %s141 = sphi 0, %s140
      %s157 = sphi 0, %s141
    $region4: #{resnet_basic.2} parent=1 // loop_header_branch
      %17 = sbr.rel (%p15) target = $region8
    $region5: #{resnet_basic.2} parent=1 // loop_body
      %s19 = ssub.s32 %s14, 1
      %s20 = ssub.s32 %s14, 2
      %s27 = sadd.s32 1, %s22
      %p28 = scmp.ge.s32.totalorder %s27, 1
      %s29 = scalar_select %p28, 0, %s27
      %s30 = sadd.s32 1, %s21
      %s31 = scalar_select %p28, %s30, %s21
      %p32 = scmp.ge.s32.totalorder %s31, 2
      %s33 = scalar_select %p32, 0, %s31
      %s34 = ssub.s32 %s21, %s33
      %s35 = ssub.s32 %s22, %s29
      %s36 = sor.u32 %s34, %s35
      %p37 = scmp.eq.s32.totalorder %s36, 0
      %s39 = sadd.s32 %s38, 1
      %s40 = scalar_select %p37, %s38, %s39
      %p43 = pneg %p37
      %p44 = scmp.eq.s32.totalorder %s14, 1
      %p45 = por %p43, %p44
      %p46 = scmp.ne.s32.totalorder %s38, %s41
      %p47 = scmp.eq.s32.totalorder %s14, 0
      %p48 = por %p46, %p47
      %p49 = scmp.ne.s32.totalorder %s38, %s41
      %p50 = scmp.eq.s32.totalorder %s19, 1
      %p51 = por %p49, %p50
      %p52 = scmp.ne.s32.totalorder %s41, %s42
      %p53 = scmp.eq.s32.totalorder %s19, 0
      %p54 = por %p52, %p53
      %p55 = scmp.ne.s32.totalorder %s41, %s42
      %p56 = scmp.eq.s32.totalorder %s20, 1
      %p57 = por %p55, %p56
      %p59 = scmp.ne.s32.totalorder %s42, %s58
      %p60 = scmp.eq.s32.totalorder %s20, 0
      %p61 = por %p59, %p60
      %s63 = sadd.s32 %s62, 1
      %p66 = scmp.eq.s32.totalorder %s14, 1
      %p67 = scmp.ne.s32.totalorder %s62, %s64
      %p68 = scmp.eq.s32.totalorder %s14, 0
      %p69 = por %p67, %p68
      %p70 = scmp.ne.s32.totalorder %s62, %s64
      %p71 = scmp.eq.s32.totalorder %s19, 1
      %p72 = por %p70, %p71
      %p73 = scmp.ne.s32.totalorder %s64, %s65
      %p74 = scmp.eq.s32.totalorder %s19, 0
      %p75 = por %p73, %p74
      %p76 = scmp.ne.s32.totalorder %s64, %s65
      %p77 = scmp.eq.s32.totalorder %s20, 1
      %p78 = por %p76, %p77
      %p80 = scmp.ne.s32.totalorder %s65, %s79
      %p81 = scmp.eq.s32.totalorder %s20, 0
      %p82 = por %p80, %p81
      %s83 = ssub.s32 %s21, %s33
      %p84 = scmp.eq.s32.totalorder %s83, 0
      %s86 = sadd.s32 %s85, 1
      %s87 = scalar_select %p84, %s85, %s86
      %p90 = pneg %p84
      %p91 = scmp.eq.s32.totalorder %s14, 1
      %p92 = por %p90, %p91
      %p93 = scmp.ne.s32.totalorder %s85, %s88
      %p94 = scmp.eq.s32.totalorder %s14, 0
      %p95 = por %p93, %p94
      %p96 = scmp.ne.s32.totalorder %s85, %s88
      %p97 = scmp.eq.s32.totalorder %s19, 1
      %p98 = por %p96, %p97
      %p99 = scmp.ne.s32.totalorder %s88, %s89
      %p100 = scmp.eq.s32.totalorder %s19, 0
      %p101 = por %p99, %p100
      %p102 = scmp.ne.s32.totalorder %s88, %s89
      %p103 = scmp.eq.s32.totalorder %s20, 1
      %p104 = por %p102, %p103
      %p106 = scmp.ne.s32.totalorder %s89, %s105
      %p107 = scmp.eq.s32.totalorder %s20, 0
      %p108 = por %p106, %p107
      %s109 = ssub.s32 %s21, %s33
      %p110 = scmp.eq.s32.totalorder %s109, 0
      %s112 = sadd.s32 %s111, 1
      %s113 = scalar_select %p110, %s111, %s112
      %p116 = pneg %p110
      %p117 = scmp.eq.s32.totalorder %s14, 1
      %p118 = por %p116, %p117
      %p119 = scmp.ne.s32.totalorder %s111, %s114
      %p120 = scmp.eq.s32.totalorder %s14, 0
      %p121 = por %p119, %p120
      %p122 = scmp.ne.s32.totalorder %s111, %s114
      %p123 = scmp.eq.s32.totalorder %s19, 1
      %p124 = por %p122, %p123
      %p125 = scmp.ne.s32.totalorder %s114, %s115
      %p126 = scmp.eq.s32.totalorder %s19, 0
      %p127 = por %p125, %p126
      %p128 = scmp.ne.s32.totalorder %s114, %s115
      %p129 = scmp.eq.s32.totalorder %s20, 1
      %p130 = por %p128, %p129
      %p132 = scmp.ne.s32.totalorder %s115, %s131
      %p133 = scmp.eq.s32.totalorder %s20, 0
      %p134 = por %p132, %p133
      %s135 = ssub.s32 %s21, %s33
      %p136 = scmp.eq.s32.totalorder %s135, 0
      %s138 = sadd.s32 %s137, 1
      %s139 = scalar_select %p136, %s137, %s138
      %p142 = pneg %p136
      %p143 = scmp.eq.s32.totalorder %s14, 1
      %p144 = por %p142, %p143
      %p145 = scmp.ne.s32.totalorder %s137, %s140
      %p146 = scmp.eq.s32.totalorder %s14, 0
      %p147 = por %p145, %p146
      %p148 = scmp.ne.s32.totalorder %s137, %s140
      %p149 = scmp.eq.s32.totalorder %s19, 1
      %p150 = por %p148, %p149
      %p151 = scmp.ne.s32.totalorder %s140, %s141
      %p152 = scmp.eq.s32.totalorder %s19, 0
      %p153 = por %p151, %p152
      %p154 = scmp.ne.s32.totalorder %s140, %s141
      %p155 = scmp.eq.s32.totalorder %s20, 1
      %p156 = por %p154, %p155
      %p158 = scmp.ne.s32.totalorder %s141, %s157
      %p159 = scmp.eq.s32.totalorder %s20, 0
      %p160 = por %p158, %p159
      %p161 = scmp.le.s32.totalorder 1, %s14
      %p162 = scmp.lt.s32.totalorder %s14, 3
      %p163 = pnand %p161, %p162
      %p164 = pneg %p163
      // Predicated region
      $region9: #{resnet_basic.2} parent=5 // pred_check
        _
      $region10: #{resnet_basic.2} parent=5 // pred_check_branch
        %166 = sbr.rel (%p163) target = $region12
      $region11: #{resnet_basic.2} parent=5 // pred_region
        %s167 = ssub.s32 %s14, 1
        // Predicated region
        $region13: #{resnet_basic.2} parent=11 // pred_check
          %p168 = pneg %p75
        $region14: #{resnet_basic.2} parent=11 // pred_check_branch
          %170 = sbr.rel (%p168) target = $region16
        $region15: #{resnet_basic.2} parent=11 // pred_region
          _
        $region16: #{resnet_basic.2} parent=11 // pred_fallthru
          _
      $region12: #{resnet_basic.2} parent=5 // pred_fallthru
        _
      %p171 = scmp.lt.s32.totalorder %s14, 2
      // Predicated region
      $region17: #{resnet_basic.2} parent=5 // pred_check
        %p172 = pneg %p171
      $region18: #{resnet_basic.2} parent=5 // pred_check_branch
        %174 = sbr.rel (%p172) target = $region20
      $region19: #{resnet_basic.2} parent=5 // pred_region
        // Predicated region
        $region21: #{resnet_basic.2} parent=19 // pred_check
          %p175 = pneg %p48
        $region22: #{resnet_basic.2} parent=19 // pred_check_branch
          %177 = sbr.rel (%p175) target = $region24
        $region23: #{resnet_basic.2} parent=19 // pred_region
          %s178 = sand.u32 %s38, 1
          %s179 = scalar_lea.sflag [#allocation3], %s178
          %s180 = sand.u32 %s38, 1
          %s181 = smul.addr %s180, 4
          %s182 = scalar_lea.vmem [#allocation2], %s181
          %184 = vsyncadd %s179, 0
          %s185 = sadd.s32 %s22, %s21
          %s186 = smul.addr %s185, 4
          %s187 = scalar_lea.hbm %s0, %s186
          %s189 = sshll.u32 %s187, 4
          %s190 = int_to_ptr.hbm [resolvable:$true] %s189
          %s191 = sshll.u32 %s182, 4
          %s192 = int_to_ptr.vmem [resolvable:$true] %s191
          %194 = dma.hbm_to_vmem [thread:$0]  %s190, 64, %s192, %s179
        $region24: #{resnet_basic.2} parent=19 // pred_fallthru
          _
      $region20: #{resnet_basic.2} parent=5 // pred_fallthru
        _
      %p195 = scmp.le.s32.totalorder 1, %s14
      %p196 = scmp.lt.s32.totalorder %s14, 3
      %p197 = pnand %p195, %p196
      %p198 = pneg %p197
      // Predicated region
      $region25: #{resnet_basic.2} parent=5 // pred_check
        _
      $region26: #{resnet_basic.2} parent=5 // pred_check_branch
        %200 = sbr.rel (%p197) target = $region28
      $region27: #{resnet_basic.2} parent=5 // pred_region
        %s201 = ssub.s32 %s14, 1
        %s202 = sand.u32 %s41, 1
        %s203 = scalar_lea.sflag [#allocation3], %s202
        %s204 = sand.u32 %s41, 1
        %s205 = smul.addr %s204, 4
        %s206 = scalar_lea.vmem [#allocation2], %s205
        // Predicated region
        $region29: #{resnet_basic.2} parent=27 // pred_check
          %p207 = pneg %p54
        $region30: #{resnet_basic.2} parent=27 // pred_check_branch
          %209 = sbr.rel (%p207) target = $region32
        $region31: #{resnet_basic.2} parent=27 // pred_region
          %211 = dma.done %s203, 64
        $region32: #{resnet_basic.2} parent=27 // pred_fallthru
          _
        %s212 = sand.u32 %s41, 1
        %s213 = scalar_lea.sflag [#allocation3], %s212
        %s214 = sand.u32 %s41, 1
        %s215 = smul.addr %s214, 4
        %s216 = scalar_lea.vmem [#allocation2], %s215
        %p217 = pneg %p54
        %p218 = pneg %p51
        %p219 = pneg %p75
        %p220 = pneg %p72
        %p221 = pneg %p101
        %p222 = pneg %p98
        %p223 = scmp.lt.s32.totalorder %s23, 1
        %s224 = scalar_select %p223, %s23, 1
        %s225 = smul.addr %s224, 4
        %s226 = scalar_lea.vmem %s2, %s225
        %p227 = pneg %p127
        %p228 = pneg %p124
        %p229 = scmp.lt.s32.totalorder %s23, 1
        %s230 = scalar_select %p229, %s23, 1
        %s231 = smul.addr %s230, 4
        %s232 = scalar_lea.vmem %s3, %s231
        %p233 = pneg %p153
        %p234 = pneg %p150
        %p235 = scmp.lt.s32.totalorder %s23, 1
        %s236 = scalar_select %p235, %s23, 1
        %s237 = smul.addr %s236, 4
        %s238 = scalar_lea.vmem %s4, %s237
        %p239 = scmp.lt.s32.totalorder %s23, 1
        %s240 = scalar_select %p239, %s23, 1
        %s241 = smul.addr %s240, 4
        %s242 = scalar_lea.vmem %s2, %s241
        %p243 = scmp.lt.s32.totalorder %s23, 1
        %s244 = scalar_select %p243, %s23, 1
        %s245 = smul.addr %s244, 4
        %s246 = scalar_lea.vmem %s3, %s245
        %p247 = scmp.lt.s32.totalorder %s23, 1
        %s248 = scalar_select %p247, %s23, 1
        %s249 = smul.addr %s248, 4
        %s250 = scalar_lea.vmem %s4, %s249
        %p251 = scmp.eq.s32.totalorder %s24, 0
        // Predicated region
        $region33: #{resnet_basic.2} parent=27 // pred_check
          %p252 = pneg %p251
        $region34: #{resnet_basic.2} parent=27 // pred_check_branch
          %254 = sbr.rel (%p252) target = $region36
        $region35: #{resnet_basic.2} parent=27 // pred_region
          %vm255 = vcmask 3072
          %256 = vst.msk [vmem:[%s242] sm:$0xf] %vm255, 0.0
          %257 = vst.msk [vmem:[%s246] sm:$0xf] %vm255, 0.0
          %vm258 = vcmask 27648
          %259 = vst.msk [vmem:[%s250] sm:$0xf] %vm258, 0.0
        $region36: #{resnet_basic.2} parent=27 // pred_fallthru
          _
        %v260 = vld [vmem:[%s1] sm:$0xf]
        %v261 = vld [vmem:[%s206] sm:$0xf]
        %263 = vset.pattern.permute.xlu0 0
        %264 = vperm.xlu0 %263, %v260
        %v265 = vpop.permute.xlu0 %264
        %v267 = vperm.slane %v261, 0
        %v268 = vmul.f32 %v265, %v267
        %269 = vset.pattern.permute.xlu0 1
        %270 = vperm.xlu0 %269, %v260
        %v271 = vpop.permute.xlu0 %270
        %v273 = vperm.slane %v261, 1
        %v274 = vmul.f32 %v271, %v273
        %275 = vset.pattern.permute.xlu0 2
        %276 = vperm.xlu0 %275, %v260
        %v277 = vpop.permute.xlu0 %276
        %v279 = vperm.slane %v261, 2
        %v280 = vmul.f32 %v277, %v279
        %v281 = vadd.f32 %v268, %v280
        %282 = vset.pattern.permute.xlu0 3
        %283 = vperm.xlu0 %282, %v260
        %v284 = vpop.permute.xlu0 %283
        %v286 = vperm.slane %v261, 3
        %v287 = vmul.f32 %v284, %v286
        %v288 = vadd.f32 %v274, %v287
        %v289 = vadd.f32 %v281, %v288
        %v290 = vmax.f32 %v289, 0.0
        %vm291 = vcmask 125952
        %v292 = vsel %vm291, %v290, 0.0
        %293 = vadd.xlane.f32.xlu0 %v292
        %v294 = vpop.xlane.xlu0 %293
        %v295 = vadd.f32 %v294, 0.0
        %v296 = vmul.f32 %v290, %v290
        %v297 = vsel %vm291, %v296, 0.0
        %298 = vadd.xlane.f32.xlu0 %v297
        %v299 = vpop.xlane.xlu0 %298
        %v300 = vadd.f32 %v299, 0.0
        %vm301 = vcmask 130048
        %v303 = vsel %vm301, %v290, 0
        %305 = vmatpush.xpose.msra.mxu0 0.0
        %306 = vmatpush.xpose.msra.mxu0 0.0
        %307 = vmatpush.xpose.msra.mxu0 0.0
        %308 = vmatpush.xpose.msra.mxu0 0.0
        %309 = vmatpush.xpose.msra.mxu0 0.0
        %310 = vmatpush.xpose.msra.mxu0 0.0
        %311 = vmatpush.xpose.msra.mxu0 0.0
        %312 = vmatpush.xpose.msra.mxu0 0.0
        %313 = vmatpush.xpose.msra.mxu0 0.0
        %314 = vmatpush.xpose.msra.mxu0 0.0
        %315 = vmatpush.xpose.msra.mxu0 0.0
        %316 = vmatpush.xpose.msra.mxu0 0.0
        %317 = vmatpush.xpose.msra.mxu0 0.0
        %318 = vmatpush.xpose.msra.mxu0 0.0
        %319 = vmatpush.xpose.msra.mxu0 0.0
        %320 = vmatpush.xpose.msra.mxu0 %v303
        %321 = vmatmul.f32.gmra.mxu0 %v303
        %v322 = vpop.f32.mrf.mxu0
        %v323 = vadd.f32 0.0, %v322
        %324 = vdwg.mxu0
        %v325 = vld [vmem:[%s242] sm:$0xf]
        %v326 = vadd.f32 %v325, %v295
        %vm327 = vcmask 3072
        %328 = vst.msk [vmem:[%s242] sm:$0xf] %vm327, %v326
        %v329 = vld [vmem:[%s246] sm:$0xf]
        %v330 = vadd.f32 %v329, %v300
        %331 = vst.msk [vmem:[%s246] sm:$0xf] %vm327, %v330
        %v332 = vld [vmem:[%s250] sm:$0xf]
        %v333 = vadd.f32 %v332, %v323
        %vm334 = vcmask 27648
        %335 = vst.msk [vmem:[%s250] sm:$0xf] %vm334, %v333
        %p336 = scmp.lt.s32.totalorder %s23, 1
        %s337 = scalar_select %p336, %s23, 1
        %s338 = smul.addr %s337, 4
        %s339 = scalar_lea.vmem %s2, %s338
        %p340 = scmp.lt.s32.totalorder %s23, 1
        %s341 = scalar_select %p340, %s23, 1
        %s342 = smul.addr %s341, 4
        %s343 = scalar_lea.vmem %s3, %s342
        %p344 = scmp.lt.s32.totalorder %s23, 1
        %s345 = scalar_select %p344, %s23, 1
        %s346 = smul.addr %s345, 4
        %s347 = scalar_lea.vmem %s4, %s346
        // Predicated region
        $region37: #{resnet_basic.2} parent=27 // pred_check
          %p348 = pneg %p98
        $region38: #{resnet_basic.2} parent=27 // pred_check_branch
          %350 = sbr.rel (%p348) target = $region40
        $region39: #{resnet_basic.2} parent=27 // pred_region
          _
        $region40: #{resnet_basic.2} parent=27 // pred_fallthru
          _
        // Predicated region
        $region41: #{resnet_basic.2} parent=27 // pred_check
          %p351 = pneg %p124
        $region42: #{resnet_basic.2} parent=27 // pred_check_branch
          %353 = sbr.rel (%p351) target = $region44
        $region43: #{resnet_basic.2} parent=27 // pred_region
          _
        $region44: #{resnet_basic.2} parent=27 // pred_fallthru
          _
        // Predicated region
        $region45: #{resnet_basic.2} parent=27 // pred_check
          %p354 = pneg %p150
        $region46: #{resnet_basic.2} parent=27 // pred_check_branch
          %356 = sbr.rel (%p354) target = $region48
        $region47: #{resnet_basic.2} parent=27 // pred_region
          _
        $region48: #{resnet_basic.2} parent=27 // pred_fallthru
          _
      $region28: #{resnet_basic.2} parent=5 // pred_fallthru
        _
      %p357 = scmp.le.s32.totalorder 2, %s14
      // Predicated region
      $region49: #{resnet_basic.2} parent=5 // pred_check
        %p358 = pneg %p357
      $region50: #{resnet_basic.2} parent=5 // pred_check_branch
        %360 = sbr.rel (%p358) target = $region52
      $region51: #{resnet_basic.2} parent=5 // pred_region
        %s361 = ssub.s32 %s14, 2
        // Predicated region
        $region53: #{resnet_basic.2} parent=51 // pred_check
          %p362 = pneg %p104
        $region54: #{resnet_basic.2} parent=51 // pred_check_branch
          %364 = sbr.rel (%p362) target = $region56
        $region55: #{resnet_basic.2} parent=51 // pred_region
          %p365 = scmp.lt.s32.totalorder %s25, 1
          %s366 = scalar_select %p365, %s25, 1
          %s367 = smul.addr %s366, 4
          %s368 = scalar_lea.vmem %s2, %s367
        $region56: #{resnet_basic.2} parent=51 // pred_fallthru
          _
        // Predicated region
        $region57: #{resnet_basic.2} parent=51 // pred_check
          %p369 = pneg %p130
        $region58: #{resnet_basic.2} parent=51 // pred_check_branch
          %371 = sbr.rel (%p369) target = $region60
        $region59: #{resnet_basic.2} parent=51 // pred_region
          %p372 = scmp.lt.s32.totalorder %s25, 1
          %s373 = scalar_select %p372, %s25, 1
          %s374 = smul.addr %s373, 4
          %s375 = scalar_lea.vmem %s3, %s374
        $region60: #{resnet_basic.2} parent=51 // pred_fallthru
          _
        // Predicated region
        $region61: #{resnet_basic.2} parent=51 // pred_check
          %p376 = pneg %p156
        $region62: #{resnet_basic.2} parent=51 // pred_check_branch
          %378 = sbr.rel (%p376) target = $region64
        $region63: #{resnet_basic.2} parent=51 // pred_region
          %p379 = scmp.lt.s32.totalorder %s25, 1
          %s380 = scalar_select %p379, %s25, 1
          %s381 = smul.addr %s380, 4
          %s382 = scalar_lea.vmem %s4, %s381
        $region64: #{resnet_basic.2} parent=51 // pred_fallthru
          _
      $region52: #{resnet_basic.2} parent=5 // pred_fallthru
        _
    $region6: #{resnet_basic.2} parent=1 // loop_footer
      %s18 = sadd.s32 1, %s14
    $region7: #{resnet_basic.2} parent=1 // loop_footer_branch
      %13 = sbr.rel target = $region3
    $region8: #{resnet_basic.2} parent=1 // loop_exit
      _
    %383 = vsyncpa [#allocation3], 1
    %s384 = scalar_lea.sflag [#allocation3], 1
    %385 = vsyncpa %s384, 1

// kernel: resnet_basic.3
$region0: #{resnet_basic.3}
  #allocation0 [shape = 'u32[]', space=smem, size = 0x4, offset = 0x4, fixed_abs, tag = 'smem constant byte address 0x4 - core index']
  #allocation1 [shape = 'u32[72,128]{1,0:T(1,128)}', space=vmem, size = 0x9000, scoped, tag = 'internal scratch']
  %s0 = inlined_call_operand.vmem [shape: f32[2,4,16], index: 0, kind: input, shape index: {}]
  %s1 = inlined_call_operand.vmem [shape: f32[4,4], index: 1, kind: input, shape index: {}]
  %s2 = inlined_call_operand.vmem [shape: f32[4,4], index: 2, kind: input, shape index: {}]
  %s3 = inlined_call_operand.vmem [shape: f32[4,1], index: 3, kind: input, shape index: {}]
  %s4 = inlined_call_operand.hbm [shape: f32[2,4,16], index: 4, kind: output, shape index: {}]
  %s5 = sld [smem:[#allocation0]]
  $region49: #{resnet_basic.3} parent=0
    _
  %s7 = ssub.s32 1, %s5
  %s8 = scalar_select 0, %s7, %s5
  $region1: #{resnet_basic.3} parent=0
    #allocation2 [shape = 'u8[4096]{0}', space=vmem, size = 0x1000, scoped, tag = 'output window, operand 0']
    #allocation3 [shape = 's32[2]{0}', space=sflag, size = 0x8, scoped, tag = 'scoped memory for resnet_basic.3']
    %9 = vsyncpa [#allocation3], 0
    %s10 = scalar_lea.sflag [#allocation3], 1
    %11 = vsyncpa %s10, 0
    loop: start=0, step=1, limit=4
    $region2: #{resnet_basic.3} parent=1 // loop_pre_header
      _
    $region3: #{resnet_basic.3} parent=1 // loop_header
      %s13 = sphi 0, %s17
      %p14 = scmp.ge.s32.totalorder %s13, 4
      %s20 = sphi 0, %s32
      %s21 = sphi 0, %s28
      %s22 = sphi 0, %s20
      %s23 = sphi 0, %s21
      %s24 = sphi 0, %s22
      %s25 = sphi 0, %s23
      %s37 = sphi 0, %s39
      %s40 = sphi 0, %s37
      %s41 = sphi 0, %s40
      %s57 = sphi 0, %s41
      %s61 = sphi 0, %s61
      %s63 = sphi 0, %s61
      %s64 = sphi 0, %s63
      %s78 = sphi 0, %s64
      %s82 = sphi 0, %s82
      %s84 = sphi 0, %s82
      %s85 = sphi 0, %s84
      %s99 = sphi 0, %s85
      %s103 = sphi 0, %s103
      %s105 = sphi 0, %s103
      %s106 = sphi 0, %s105
      %s120 = sphi 0, %s106
      %s128 = sphi 0, %s130
      %s131 = sphi 0, %s128
      %s132 = sphi 0, %s131
      %s148 = sphi 0, %s132
    $region4: #{resnet_basic.3} parent=1 // loop_header_branch
      %16 = sbr.rel (%p14) target = $region8
    $region5: #{resnet_basic.3} parent=1 // loop_body
      %s18 = ssub.s32 %s13, 1
      %s19 = ssub.s32 %s13, 2
      %s26 = sadd.s32 1, %s21
      %p27 = scmp.ge.s32.totalorder %s26, 1
      %s28 = scalar_select %p27, 0, %s26
      %s29 = sadd.s32 1, %s20
      %s30 = scalar_select %p27, %s29, %s20
      %p31 = scmp.ge.s32.totalorder %s30, 2
      %s32 = scalar_select %p31, 0, %s30
      %s33 = ssub.s32 %s20, %s32
      %s34 = ssub.s32 %s21, %s28
      %s35 = sor.u32 %s33, %s34
      %p36 = scmp.eq.s32.totalorder %s35, 0
      %s38 = sadd.s32 %s37, 1
      %s39 = scalar_select %p36, %s37, %s38
      %p42 = pneg %p36
      %p43 = scmp.eq.s32.totalorder %s13, 1
      %p44 = por %p42, %p43
      %p45 = scmp.ne.s32.totalorder %s37, %s40
      %p46 = scmp.eq.s32.totalorder %s13, 0
      %p47 = por %p45, %p46
      %p48 = scmp.ne.s32.totalorder %s37, %s40
      %p49 = scmp.eq.s32.totalorder %s18, 1
      %p50 = por %p48, %p49
      %p51 = scmp.ne.s32.totalorder %s40, %s41
      %p52 = scmp.eq.s32.totalorder %s18, 0
      %p53 = por %p51, %p52
      %p54 = scmp.ne.s32.totalorder %s40, %s41
      %p55 = scmp.eq.s32.totalorder %s19, 1
      %p56 = por %p54, %p55
      %p58 = scmp.ne.s32.totalorder %s41, %s57
      %p59 = scmp.eq.s32.totalorder %s19, 0
      %p60 = por %p58, %p59
      %s62 = sadd.s32 %s61, 1
      %p65 = scmp.eq.s32.totalorder %s13, 1
      %p66 = scmp.ne.s32.totalorder %s61, %s63
      %p67 = scmp.eq.s32.totalorder %s13, 0
      %p68 = por %p66, %p67
      %p69 = scmp.ne.s32.totalorder %s61, %s63
      %p70 = scmp.eq.s32.totalorder %s18, 1
      %p71 = por %p69, %p70
      %p72 = scmp.ne.s32.totalorder %s63, %s64
      %p73 = scmp.eq.s32.totalorder %s18, 0
      %p74 = por %p72, %p73
      %p75 = scmp.ne.s32.totalorder %s63, %s64
      %p76 = scmp.eq.s32.totalorder %s19, 1
      %p77 = por %p75, %p76
      %p79 = scmp.ne.s32.totalorder %s64, %s78
      %p80 = scmp.eq.s32.totalorder %s19, 0
      %p81 = por %p79, %p80
      %s83 = sadd.s32 %s82, 1
      %p86 = scmp.eq.s32.totalorder %s13, 1
      %p87 = scmp.ne.s32.totalorder %s82, %s84
      %p88 = scmp.eq.s32.totalorder %s13, 0
      %p89 = por %p87, %p88
      %p90 = scmp.ne.s32.totalorder %s82, %s84
      %p91 = scmp.eq.s32.totalorder %s18, 1
      %p92 = por %p90, %p91
      %p93 = scmp.ne.s32.totalorder %s84, %s85
      %p94 = scmp.eq.s32.totalorder %s18, 0
      %p95 = por %p93, %p94
      %p96 = scmp.ne.s32.totalorder %s84, %s85
      %p97 = scmp.eq.s32.totalorder %s19, 1
      %p98 = por %p96, %p97
      %p100 = scmp.ne.s32.totalorder %s85, %s99
      %p101 = scmp.eq.s32.totalorder %s19, 0
      %p102 = por %p100, %p101
      %s104 = sadd.s32 %s103, 1
      %p107 = scmp.eq.s32.totalorder %s13, 1
      %p108 = scmp.ne.s32.totalorder %s103, %s105
      %p109 = scmp.eq.s32.totalorder %s13, 0
      %p110 = por %p108, %p109
      %p111 = scmp.ne.s32.totalorder %s103, %s105
      %p112 = scmp.eq.s32.totalorder %s18, 1
      %p113 = por %p111, %p112
      %p114 = scmp.ne.s32.totalorder %s105, %s106
      %p115 = scmp.eq.s32.totalorder %s18, 0
      %p116 = por %p114, %p115
      %p117 = scmp.ne.s32.totalorder %s105, %s106
      %p118 = scmp.eq.s32.totalorder %s19, 1
      %p119 = por %p117, %p118
      %p121 = scmp.ne.s32.totalorder %s106, %s120
      %p122 = scmp.eq.s32.totalorder %s19, 0
      %p123 = por %p121, %p122
      %s124 = ssub.s32 %s20, %s32
      %s125 = ssub.s32 %s21, %s28
      %s126 = sor.u32 %s124, %s125
      %p127 = scmp.eq.s32.totalorder %s126, 0
      %s129 = sadd.s32 %s128, 1
      %s130 = scalar_select %p127, %s128, %s129
      %p133 = pneg %p127
      %p134 = scmp.eq.s32.totalorder %s13, 1
      %p135 = por %p133, %p134
      %p136 = scmp.ne.s32.totalorder %s128, %s131
      %p137 = scmp.eq.s32.totalorder %s13, 0
      %p138 = por %p136, %p137
      %p139 = scmp.ne.s32.totalorder %s128, %s131
      %p140 = scmp.eq.s32.totalorder %s18, 1
      %p141 = por %p139, %p140
      %p142 = scmp.ne.s32.totalorder %s131, %s132
      %p143 = scmp.eq.s32.totalorder %s18, 0
      %p144 = por %p142, %p143
      %p145 = scmp.ne.s32.totalorder %s131, %s132
      %p146 = scmp.eq.s32.totalorder %s19, 1
      %p147 = por %p145, %p146
      %p149 = scmp.ne.s32.totalorder %s132, %s148
      %p150 = scmp.eq.s32.totalorder %s19, 0
      %p151 = por %p149, %p150
      %p152 = scmp.le.s32.totalorder 1, %s13
      %p153 = scmp.lt.s32.totalorder %s13, 3
      %p154 = pnand %p152, %p153
      %p155 = pneg %p154
      // Predicated region
      $region9: #{resnet_basic.3} parent=5 // pred_check
        _
      $region10: #{resnet_basic.3} parent=5 // pred_check_branch
        %157 = sbr.rel (%p154) target = $region12
      $region11: #{resnet_basic.3} parent=5 // pred_region
        %s158 = ssub.s32 %s13, 1
        // Predicated region
        $region13: #{resnet_basic.3} parent=11 // pred_check
          %p159 = pneg %p74
        $region14: #{resnet_basic.3} parent=11 // pred_check_branch
          %161 = sbr.rel (%p159) target = $region16
        $region15: #{resnet_basic.3} parent=11 // pred_region
          _
        $region16: #{resnet_basic.3} parent=11 // pred_fallthru
          _
        // Predicated region
        $region17: #{resnet_basic.3} parent=11 // pred_check
          %p162 = pneg %p95
        $region18: #{resnet_basic.3} parent=11 // pred_check_branch
          %164 = sbr.rel (%p162) target = $region20
        $region19: #{resnet_basic.3} parent=11 // pred_region
          _
        $region20: #{resnet_basic.3} parent=11 // pred_fallthru
          _
        // Predicated region
        $region21: #{resnet_basic.3} parent=11 // pred_check
          %p165 = pneg %p116
        $region22: #{resnet_basic.3} parent=11 // pred_check_branch
          %167 = sbr.rel (%p165) target = $region24
        $region23: #{resnet_basic.3} parent=11 // pred_region
          _
        $region24: #{resnet_basic.3} parent=11 // pred_fallthru
          _
      $region12: #{resnet_basic.3} parent=5 // pred_fallthru
        _
      %p168 = scmp.lt.s32.totalorder %s13, 2
      // Predicated region
      $region25: #{resnet_basic.3} parent=5 // pred_check
        %p169 = pneg %p168
      $region26: #{resnet_basic.3} parent=5 // pred_check_branch
        %171 = sbr.rel (%p169) target = $region28
      $region27: #{resnet_basic.3} parent=5 // pred_region
        // Predicated region
        $region29: #{resnet_basic.3} parent=27 // pred_check
          %p172 = pneg %p47
        $region30: #{resnet_basic.3} parent=27 // pred_check_branch
          %174 = sbr.rel (%p172) target = $region32
        $region31: #{resnet_basic.3} parent=27 // pred_region
          %p175 = scmp.lt.s32.totalorder %s20, 1
          %s176 = scalar_select %p175, %s20, 1
          %p177 = scmp.lt.s32.totalorder %s21, 0
          %s178 = scalar_select %p177, %s21, 0
          %s179 = sadd.s32 %s178, %s176
          %s180 = smul.addr %s179, 4
          %s181 = scalar_lea.vmem %s0, %s180
        $region32: #{resnet_basic.3} parent=27 // pred_fallthru
          _
      $region28: #{resnet_basic.3} parent=5 // pred_fallthru
        _
      %p182 = scmp.le.s32.totalorder 1, %s13
      %p183 = scmp.lt.s32.totalorder %s13, 3
      %p184 = pnand %p182, %p183
      %p185 = pneg %p184
      // Predicated region
      $region33: #{resnet_basic.3} parent=5 // pred_check
        _
      $region34: #{resnet_basic.3} parent=5 // pred_check_branch
        %187 = sbr.rel (%p184) target = $region36
      $region35: #{resnet_basic.3} parent=5 // pred_region
        %s188 = ssub.s32 %s13, 1
        %p189 = scmp.lt.s32.totalorder %s22, 1
        %s190 = scalar_select %p189, %s22, 1
        %p191 = scmp.lt.s32.totalorder %s23, 0
        %s192 = scalar_select %p191, %s23, 0
        %s193 = sadd.s32 %s192, %s190
        %s194 = smul.addr %s193, 4
        %s195 = scalar_lea.vmem %s0, %s194
        %p196 = pneg %p53
        %p197 = pneg %p50
        %p198 = pneg %p74
        %p199 = pneg %p71
        %p200 = pneg %p95
        %p201 = pneg %p92
        %p202 = pneg %p116
        %p203 = pneg %p113
        %p204 = pneg %p144
        %p205 = pneg %p141
        %s206 = sand.u32 %s131, 1
        %s207 = scalar_lea.sflag [#allocation3], %s206
        %s208 = sand.u32 %s131, 1
        %s209 = smul.addr %s208, 4
        %s210 = scalar_lea.vmem [#allocation2], %s209
        %p211 = scmp.lt.s32.totalorder %s22, 1
        %s212 = scalar_select %p211, %s22, 1
        %p213 = scmp.lt.s32.totalorder %s23, 0
        %s214 = scalar_select %p213, %s23, 0
        %s215 = sadd.s32 %s214, %s212
        %s216 = smul.addr %s215, 4
        %s217 = scalar_lea.vmem %s0, %s216
        %v218 = vld [vmem:[%s1] sm:$0xf]
        %v219 = vld [vmem:[%s2] sm:$0xf]
        %v220 = vld [vmem:[%s3] sm:$0xf]
        %v221 = vld [vmem:[%s217] sm:$0xf]
        %223 = vset.pattern.permute.xlu0 0
        %224 = vperm.xlu0 %223, %v218
        %v225 = vpop.permute.xlu0 %224
        %v227 = vperm.slane %v221, 0
        %v228 = vmul.f32 %v225, %v227
        %229 = vset.pattern.permute.xlu0 1
        %230 = vperm.xlu0 %229, %v218
        %v231 = vpop.permute.xlu0 %230
        %v233 = vperm.slane %v221, 1
        %v234 = vmul.f32 %v231, %v233
        %235 = vset.pattern.permute.xlu0 2
        %236 = vperm.xlu0 %235, %v218
        %v237 = vpop.permute.xlu0 %236
        %v239 = vperm.slane %v221, 2
        %v240 = vmul.f32 %v237, %v239
        %v241 = vadd.f32 %v228, %v240
        %242 = vset.pattern.permute.xlu0 3
        %243 = vperm.xlu0 %242, %v218
        %v244 = vpop.permute.xlu0 %243
        %v246 = vperm.slane %v221, 3
        %v247 = vmul.f32 %v244, %v246
        %v248 = vadd.f32 %v234, %v247
        %v249 = vadd.f32 %v241, %v248
        %v250 = vmax.f32 %v249, 0.0
        %252 = vset.pattern.permute.xlu0 0
        %253 = vperm.xlu0 %252, %v219
        %v254 = vpop.permute.xlu0 %253
        %v256 = vperm.slane %v250, 0
        %v257 = vmul.f32 %v254, %v256
        %258 = vset.pattern.permute.xlu0 1
        %259 = vperm.xlu0 %258, %v219
        %v260 = vpop.permute.xlu0 %259
        %v262 = vperm.slane %v250, 1
        %v263 = vmul.f32 %v260, %v262
        %264 = vset.pattern.permute.xlu0 2
        %265 = vperm.xlu0 %264, %v219
        %v266 = vpop.permute.xlu0 %265
        %v268 = vperm.slane %v250, 2
        %v269 = vmul.f32 %v266, %v268
        %v270 = vadd.f32 %v257, %v269
        %271 = vset.pattern.permute.xlu0 3
        %272 = vperm.xlu0 %271, %v219
        %v273 = vpop.permute.xlu0 %272
        %v275 = vperm.slane %v250, 3
        %v276 = vmul.f32 %v273, %v275
        %v277 = vadd.f32 %v263, %v276
        %v278 = vadd.f32 %v270, %v277
        %280 = vset.pattern.permute.xlu0 0
        %281 = vperm.xlu0 %280, %v220
        %v282 = vpop.permute.xlu0 %281
        %v284 = vadd.f32 %v278, %v282
        %v285 = vadd.f32 %v284, %v221
        %v286 = vmax.f32 %v285, 0.0
        %vm287 = vcmask 125952
        %288 = vst.msk [vmem:[%s210] sm:$0xf] %vm287, %v286
        %s289 = sand.u32 %s131, 1
        %s290 = scalar_lea.sflag [#allocation3], %s289
        %s291 = sand.u32 %s131, 1
        %s292 = smul.addr %s291, 4
        %s293 = scalar_lea.vmem [#allocation2], %s292
        // Predicated region
        $region37: #{resnet_basic.3} parent=35 // pred_check
          %p294 = pneg %p141
        $region38: #{resnet_basic.3} parent=35 // pred_check_branch
          %296 = sbr.rel (%p294) target = $region40
        $region39: #{resnet_basic.3} parent=35 // pred_region
          %298 = vsyncadd %s290, 0
          %s299 = sadd.s32 %s23, %s22
          %s300 = smul.addr %s299, 4
          %s301 = scalar_lea.hbm %s4, %s300
          %s303 = sshll.u32 %s293, 4
          %s304 = int_to_ptr.vmem [resolvable:$true] %s303
          %s305 = sshll.u32 %s301, 4
          %s306 = int_to_ptr.hbm [resolvable:$true] %s305
          %308 = dma.vmem_to_hbm [thread:$0]  %s304, 64, %s306, %s290
        $region40: #{resnet_basic.3} parent=35 // pred_fallthru
          _
      $region36: #{resnet_basic.3} parent=5 // pred_fallthru
        _
      %p309 = scmp.le.s32.totalorder 2, %s13
      // Predicated region
      $region41: #{resnet_basic.3} parent=5 // pred_check
        %p310 = pneg %p309
      $region42: #{resnet_basic.3} parent=5 // pred_check_branch
        %312 = sbr.rel (%p310) target = $region44
      $region43: #{resnet_basic.3} parent=5 // pred_region
        %s313 = ssub.s32 %s13, 2
        // Predicated region
        $region45: #{resnet_basic.3} parent=43 // pred_check
          %p314 = pneg %p147
        $region46: #{resnet_basic.3} parent=43 // pred_check_branch
          %316 = sbr.rel (%p314) target = $region48
        $region47: #{resnet_basic.3} parent=43 // pred_region
          %s317 = sand.u32 %s132, 1
          %s318 = scalar_lea.sflag [#allocation3], %s317
          %s319 = sand.u32 %s132, 1
          %s320 = smul.addr %s319, 4
          %s321 = scalar_lea.vmem [#allocation2], %s320
          %323 = dma.done %s318, 64
        $region48: #{resnet_basic.3} parent=43 // pred_fallthru
          _
      $region44: #{resnet_basic.3} parent=5 // pred_fallthru
        _
    $region6: #{resnet_basic.3} parent=1 // loop_footer
      %s17 = sadd.s32 1, %s13
    $region7: #{resnet_basic.3} parent=1 // loop_footer_branch
      %12 = sbr.rel target = $region3
    $region8: #{resnet_basic.3} parent=1 // loop_exit
      _
    %324 = vsyncpa [#allocation3], 1
    %s325 = scalar_lea.sflag [#allocation3], 1
    %326 = vsyncpa %s325, 1

</llo_original>
